<compile_context>
chip_gen: v5e
topology: v5e:2x2
jax: 0.10.0
libtpu: 0.0.40
codegen_flags: <defaults>
</compile_context>

<pallas_src>
import functools

import jax
import jax.numpy as jnp
from jax.experimental import pallas as pl
from jax.experimental.pallas import tpu as pltpu


def _f1_partial_sums_kernel(logits_ref, labels_ref, tp_ref, sy_ref, syh_ref,
                            *, total_rows, tile_rows, needs_mask, num_tiles):
    """Accumulate per-class tp / sum(y) / sum(y_hat) over the batch tiles."""
    k = pl.program_id(1)  # reduction axis (tiles within this split)

    # --- init resident output accumulators on the first tile of this split ---
    @pl.when(k == 0)
    def _():
        tp_ref[...] = jnp.zeros_like(tp_ref)
        sy_ref[...] = jnp.zeros_like(sy_ref)
        syh_ref[...] = jnp.zeros_like(syh_ref)

    # --- hot path: upcast to f32, 1-EUP sigmoid, one mul, cross-vreg adds ---
    x = logits_ref[...].astype(jnp.float32)
    y_hat = 0.5 * jnp.tanh(0.5 * x) + 0.5          # == sigmoid(x), single EUP op
    y = labels_ref[...].astype(jnp.float32)

    c = y.shape[-1]
    r = tile_rows // 8

    def accumulate(yv, yhv):
        # Keep accumulators (8, C): cross-vreg VALU adds only; the 8->1
        # sublane (XLU) collapse happens once, outside the kernel.
        tp_ref[...] += jnp.sum((yv * yhv).reshape(r, 8, c), axis=0)
        sy_ref[...] += jnp.sum(yv.reshape(r, 8, c), axis=0)
        syh_ref[...] += jnp.sum(yhv.reshape(r, 8, c), axis=0)

    if needs_mask:
        # Only the last logical tile (and any fully-clamped over-coverage
        # tiles) can contain out-of-bounds rows -> pay the iota/compare/select
        # cost only there; all interior tiles take the mask-free path.
        s = pl.program_id(0)
        tile_idx = s * pl.num_programs(1) + k       # unclamped logical tile
        is_edge = tile_idx >= (num_tiles - 1)

        @pl.when(is_edge)
        def _():
            row0 = tile_idx * tile_rows
            local = jax.lax.broadcasted_iota(jnp.int32, (tile_rows, 1), 0)
            valid = (row0 + local) < total_rows
            # jnp.where (not multiply) so garbage/NaN in OOB rows cannot leak.
            accumulate(jnp.where(valid, y, 0.0), jnp.where(valid, y_hat, 0.0))

        @pl.when(jnp.logical_not(is_edge))
        def _():
            accumulate(y, y_hat)
    else:
        accumulate(y, y_hat)


def _vmem_capacity_bytes():
    """Physical VMEM per core (v5e/v6e 128 MiB, v7x 64 MiB); safe fallback."""
    try:
        cap = int(pltpu.get_tpu_info().vmem_capacity_bytes)
        if cap > 0:
            return cap
    except Exception:
        pass
    return 64 << 20  # conservative (v7x per-TensorCore)


def _default_num_splits():
    """2-way 'parallel' split only helps on v7x (2 TensorCores per chip)."""
    try:
        kind = jax.devices()[0].device_kind.lower()
    except Exception:
        return 1
    return 2 if ("v7" in kind or "7x" in kind) else 1


def f1_with_logits_loss(logits, labels, *, epsilon=1e-8, tile_n=None,
                        num_splits=None):
    """Pallas TPU implementation of F1WithLogitsLoss.forward.

    logits, labels: [N, C] arrays.  Math is done in f32 inside the kernel, so
    bf16 logits and bf16/int8 labels are supported and recommended upstream
    ({0,1} labels are exact in bf16) -- narrow inputs directly cut HBM traffic.
    Returns a float32 scalar (matches torch's 0-dim .mean() result).
    """
    assert logits.ndim == 2 and logits.shape == labels.shape
    N, C = logits.shape

    lo_sz = jnp.dtype(logits.dtype).itemsize
    la_sz = jnp.dtype(labels.dtype).itemsize
    # Packed-sublane granularity of the narrowest input: f32->8, bf16->16, i8->32.
    gran = max(8, 32 // max(1, min(lo_sz, la_sz)))

    def round_up(v, m):
        return -(-v // m) * m

    # Generation-aware per-step VMEM budget: 2 double-buffered input tiles plus
    # ~4 f32-sized in-body temporaries (upcasts, product, edge-mask select).
    physical_vmem = _vmem_capacity_bytes()
    budget = min(48 << 20, physical_vmem // 2)
    bytes_per_row = C * (2 * (lo_sz + la_sz) + 4 * 4)
    cap_rows = max(gran, (budget // bytes_per_row) // gran * gran)

    tile = min(cap_rows, round_up(N, gran))
    if tile_n is not None:
        tile = min(tile, round_up(max(int(tile_n), 1), gran))
    tile = max(gran, (tile // gran) * gran)

    num_tiles = -(-N // tile)                             # cdiv
    if num_splits is None:
        num_splits = _default_num_splits()
    n_split = max(1, min(int(num_splits), num_tiles))     # 'parallel' axis
    tiles_per_split = -(-num_tiles // n_split)
    coverage = n_split * tiles_per_split * tile
    needs_mask = coverage != N                            # grid over-covers N
    needs_clamp = n_split * tiles_per_split > num_tiles

    def row_block(s, k):
        t = s * tiles_per_split + k
        if needs_clamp:
            # Fully-out-of-range tiles re-read the last valid tile (cheap &
            # safe); their contribution is zeroed by the in-kernel edge mask.
            t = jnp.minimum(t, num_tiles - 1)
        return (t, 0)

    kernel = functools.partial(
        _f1_partial_sums_kernel,
        total_rows=N, tile_rows=tile, needs_mask=needs_mask,
        num_tiles=num_tiles)

    # Explicit scoped-VMEM limit so large tiles don't trip the 16/32 MiB
    # defaults, while staying well inside each generation's physical VMEM.
    est_vmem = tile * bytes_per_row + (2 << 20)
    vmem_limit = int(min(int(physical_vmem * 0.8),
                         max(est_vmem + (8 << 20), 32 << 20)))

    part = jax.ShapeDtypeStruct((n_split, 8, C), jnp.float32)
    tp_p, sy_p, syh_p = pl.pallas_call(
        kernel,
        out_shape=(part, part, part),
        grid_spec=pltpu.PrefetchScalarGridSpec(
            num_scalar_prefetch=0,
            grid=(n_split, tiles_per_split),
            in_specs=[
                pl.BlockSpec((tile, C), row_block),
                pl.BlockSpec((tile, C), row_block),
            ],
            out_specs=(
                pl.BlockSpec((None, 8, C), lambda s, k: (s, 0, 0)),
                pl.BlockSpec((None, 8, C), lambda s, k: (s, 0, 0)),
                pl.BlockSpec((None, 8, C), lambda s, k: (s, 0, 0)),
            ),
        ),
        compiler_params=pltpu.CompilerParams(
            # split axis 'parallel' (megacore on v7x), batch tiles 'arbitrary'
            dimension_semantics=("parallel", "arbitrary"),
            vmem_limit_bytes=vmem_limit,
        ),
    )(logits, labels)

    # --- finalize (O(C) work) in plain JAX ---
    tp = jnp.sum(tp_p, axis=(0, 1))
    s_y = jnp.sum(sy_p, axis=(0, 1))
    s_yhat = jnp.sum(syh_p, axis=(0, 1))
    fp = s_yhat - tp
    fn = s_y - tp
    tn = jnp.float32(N) - s_y - s_yhat + tp

    eps = jnp.float32(epsilon)
    f1_1 = 2.0 * tp / (2.0 * tp + fn + fp + eps)
    f1_1 = 1.0 - jnp.clip(f1_1, eps, 1.0 - eps)
    f1_0 = 2.0 * tn / (2.0 * tn + fn + fp + eps)
    f1_0 = 1.0 - jnp.clip(f1_0, eps, 1.0 - eps)
    return jnp.mean(0.5 * (f1_1 + f1_0))


def _f1_with_logits_loss_ref(logits, labels, epsilon=1e-8):
    """Pure-JAX mirror of the PyTorch reference."""
    y_hat = jax.nn.sigmoid(logits.astype(jnp.float32))
    y = labels.astype(jnp.float32)
    tp = (y * y_hat).sum(axis=0)
    tn = ((1 - y) * (1 - y_hat)).sum(axis=0)
    fp = ((1 - y) * y_hat).sum(axis=0)
    fn = (y * (1 - y_hat)).sum(axis=0)
    f1_1 = 2 * tp / (2 * tp + fn + fp + epsilon)
    f1_1 = 1 - jnp.clip(f1_1, epsilon, 1 - epsilon)
    f1_0 = 2 * tn / (2 * tn + fn + fp + epsilon)
    f1_0 = 1 - jnp.clip(f1_0, epsilon, 1 - epsilon)
    return (0.5 * (f1_1 + f1_0)).mean()


if __name__ == "__main__":
    key = jax.random.PRNGKey(0)
    k1, k2 = jax.random.split(key)

    N, C = 203, 128  # ragged batch (NOT a multiple of 8) -> exercises no-pad path
    logits = jax.random.normal(k1, (N, C), dtype=jnp.float32) * 2.0
    labels = (jax.random.uniform(k2, (N, C)) > 0.5).astype(jnp.float32)

    ref = _f1_with_logits_loss_ref(logits, labels)

    # 1) default config: one big ragged tile, edge-masked, no wrapper padding.
    out = jax.block_until_ready(f1_with_logits_loss(logits, labels))
    assert jnp.allclose(out, ref, atol=1e-4, rtol=1e-4), (out, ref)

    # 2) small tile + forced 2-way 'parallel' split: exercises index clamp and
    #    the pl.when-predicated edge mask on the ragged tail.
    out2 = jax.block_until_ready(
        f1_with_logits_loss(logits, labels, tile_n=48, num_splits=2))
    assert jnp.allclose(out2, ref, atol=1e-4, rtol=1e-4), (out2, ref)

    # 3) bf16 logits + bf16 labels (halves HBM traffic; {0,1} exact in bf16),
    #    16-row sublane granularity path.
    lo_bf16 = logits.astype(jnp.bfloat16)
    la_bf16 = labels.astype(jnp.bfloat16)
    out3 = jax.block_until_ready(f1_with_logits_loss(lo_bf16, la_bf16, tile_n=64))
    ref3 = _f1_with_logits_loss_ref(lo_bf16.astype(jnp.float32),
                                    la_bf16.astype(jnp.float32))
    assert jnp.allclose(out3, ref3, atol=1e-4, rtol=1e-4), (out3, ref3)

    # 4) mixed dtypes: f32 logits + bf16 labels (recommended caller contract).
    out4 = jax.block_until_ready(f1_with_logits_loss(logits, la_bf16))
    assert jnp.allclose(out4, ref, atol=1e-4, rtol=1e-4), (out4, ref)

    print("KERNEL_OK")
</pallas_src>

<mosaic_0001>
module attributes {stable_mosaic.version = 11 : i64} {
  func.func @_f1_partial_sums_kernel(%arg0: i32, %arg1: i32, %arg2: memref<208x128xf32, #tpu.memory_space<vmem>>, %arg3: memref<208x128xf32, #tpu.memory_space<vmem>>, %arg4: memref<1x8x128xf32, #tpu.memory_space<vmem>>, %arg5: memref<1x8x128xf32, #tpu.memory_space<vmem>>, %arg6: memref<1x8x128xf32, #tpu.memory_space<vmem>>) attributes {dimension_semantics = [#tpu.dimension_semantics<parallel>, #tpu.dimension_semantics<arbitrary>], iteration_bounds = array<i64: 1, 1>, scalar_prefetch = 0 : i64, scratch_operands = 0 : i64, tpu.core_type = #tpu.core_type<tc>, window_params = [{transform_indices = @transform_0, window_bounds = array<i64: 208, 128>}, {transform_indices = @transform_1, window_bounds = array<i64: 208, 128>}, {transform_indices = @transform_2, window_bounds = array<i64: 1, 8, 128>}, {transform_indices = @transform_3, window_bounds = array<i64: 1, 8, 128>}, {transform_indices = @transform_4, window_bounds = array<i64: 1, 8, 128>}]} {
    %c0_i32 = arith.constant 0 : i32
    %0 = arith.cmpi eq, %arg1, %c0_i32 : i32
    %1 = arith.extui %0 : i1 to i32
    %c0_i32_0 = arith.constant 0 : i32
    %2 = arith.cmpi ne, %1, %c0_i32_0 : i32
    scf.if %2 {
      %cst_9 = arith.constant 0.000000e+00 : f32
      %20 = vector.broadcast %cst_9 : f32 to vector<8x128xf32>
      %c0_10 = arith.constant 0 : index
      %c0_11 = arith.constant 0 : index
      %c0_12 = arith.constant 0 : index
      %21 = vector.load %arg4[%c0_10, %c0_11, %c0_12] : memref<1x8x128xf32, #tpu.memory_space<vmem>>, vector<1x8x128xf32>
      %22 = vector.shape_cast %21 : vector<1x8x128xf32> to vector<8x128xf32>
      %23 = vector.shape_cast %20 : vector<8x128xf32> to vector<1x8x128xf32>
      tpu.vector_store %arg4[%c0_10, %c0_11, %c0_12], %23 {strides = array<i32>} : memref<1x8x128xf32, #tpu.memory_space<vmem>>, vector<1x8x128xf32>,
      %cst_13 = arith.constant 0.000000e+00 : f32
      %24 = vector.broadcast %cst_13 : f32 to vector<8x128xf32>
      %c0_14 = arith.constant 0 : index
      %c0_15 = arith.constant 0 : index
      %c0_16 = arith.constant 0 : index
      %25 = vector.load %arg5[%c0_14, %c0_15, %c0_16] : memref<1x8x128xf32, #tpu.memory_space<vmem>>, vector<1x8x128xf32>
      %26 = vector.shape_cast %25 : vector<1x8x128xf32> to vector<8x128xf32>
      %27 = vector.shape_cast %24 : vector<8x128xf32> to vector<1x8x128xf32>
      tpu.vector_store %arg5[%c0_14, %c0_15, %c0_16], %27 {strides = array<i32>} : memref<1x8x128xf32, #tpu.memory_space<vmem>>, vector<1x8x128xf32>,
      %cst_17 = arith.constant 0.000000e+00 : f32
      %28 = vector.broadcast %cst_17 : f32 to vector<8x128xf32>
      %c0_18 = arith.constant 0 : index
      %c0_19 = arith.constant 0 : index
      %c0_20 = arith.constant 0 : index
      %29 = vector.load %arg6[%c0_18, %c0_19, %c0_20] : memref<1x8x128xf32, #tpu.memory_space<vmem>>, vector<1x8x128xf32>
      %30 = vector.shape_cast %29 : vector<1x8x128xf32> to vector<8x128xf32>
      %31 = vector.shape_cast %28 : vector<8x128xf32> to vector<1x8x128xf32>
      tpu.vector_store %arg6[%c0_18, %c0_19, %c0_20], %31 {strides = array<i32>} : memref<1x8x128xf32, #tpu.memory_space<vmem>>, vector<1x8x128xf32>,
    } else {
    }
    %c0 = arith.constant 0 : index
    %c0_1 = arith.constant 0 : index
    %3 = vector.load %arg2[%c0, %c0_1] : memref<208x128xf32, #tpu.memory_space<vmem>>, vector<208x128xf32>
    %cst = arith.constant 5.000000e-01 : f32
    %4 = vector.broadcast %cst : f32 to vector<208x128xf32>
    %5 = arith.mulf %4, %3 : vector<208x128xf32>
    %6 = math.tanh %5 : vector<208x128xf32>
    %cst_2 = arith.constant 5.000000e-01 : f32
    %7 = vector.broadcast %cst_2 : f32 to vector<208x128xf32>
    %8 = arith.mulf %7, %6 : vector<208x128xf32>
    %cst_3 = arith.constant 5.000000e-01 : f32
    %9 = vector.broadcast %cst_3 : f32 to vector<208x128xf32>
    %10 = arith.addf %8, %9 : vector<208x128xf32>
    %c0_4 = arith.constant 0 : index
    %c0_5 = arith.constant 0 : index
    %11 = vector.load %arg3[%c0_4, %c0_5] : memref<208x128xf32, #tpu.memory_space<vmem>>, vector<208x128xf32>
    %c1_i32 = arith.constant 1 : i32
    %12 = arith.muli %arg0, %c1_i32 : i32
    %13 = arith.addi %12, %arg1 : i32
    %c0_i32_6 = arith.constant 0 : i32
    %14 = arith.cmpi sge, %13, %c0_i32_6 : i32
    %15 = arith.extui %14 : i1 to i32
    %c0_i32_7 = arith.constant 0 : i32
    %16 = arith.cmpi ne, %15, %c0_i32_7 : i32
    scf.if %16 {
      %c208_i32 = arith.constant 208 : i32
      %20 = arith.muli %13, %c208_i32 : i32
      %21 = tpu.iota {dimensions = array<i32: 0>} : vector<208x1xi32>
      %22 = vector.broadcast %20 : i32 to vector<208x1xi32>
      %23 = arith.addi %22, %21 : vector<208x1xi32>
      %c203_i32 = arith.constant 203 : i32
      %24 = vector.broadcast %c203_i32 : i32 to vector<208x1xi32>
      %25 = arith.cmpi slt, %23, %24 : vector<208x1xi32>
      %cst_9 = arith.constant 0.000000e+00 : f32
      %26 = vector.shape_cast %25 : vector<208x1xi1> to vector<208x1xi1>
      %27 = vector.broadcast %26 : vector<208x1xi1> to vector<208x128xi1>
      %28 = vector.broadcast %cst_9 : f32 to vector<208x128xf32>
      %29 = arith.select %27, %11, %28 : vector<208x128xi1>, vector<208x128xf32>
      %cst_10 = arith.constant 0.000000e+00 : f32
      %30 = vector.shape_cast %25 : vector<208x1xi1> to vector<208x1xi1>
      %31 = vector.broadcast %30 : vector<208x1xi1> to vector<208x128xi1>
      %32 = vector.broadcast %cst_10 : f32 to vector<208x128xf32>
      %33 = arith.select %31, %10, %32 : vector<208x128xi1>, vector<208x128xf32>
      %c0_11 = arith.constant 0 : index
      %c0_12 = arith.constant 0 : index
      %c0_13 = arith.constant 0 : index
      %34 = vector.load %arg4[%c0_11, %c0_12, %c0_13] : memref<1x8x128xf32, #tpu.memory_space<vmem>>, vector<1x8x128xf32>
      %35 = vector.shape_cast %34 : vector<1x8x128xf32> to vector<8x128xf32>
      %36 = arith.mulf %29, %33 : vector<208x128xf32>
      %37 = vector.shape_cast %36 : vector<208x128xf32> to vector<26x8x128xf32>
      %cst_14 = arith.constant dense<0.000000e+00> : vector<8x128xf32>
      %38 = vector.multi_reduction <add>, %37, %cst_14 [0] : vector<26x8x128xf32> to vector<8x128xf32>
      %39 = arith.addf %35, %38 : vector<8x128xf32>
      %c0_15 = arith.constant 0 : index
      %c0_16 = arith.constant 0 : index
      %c0_17 = arith.constant 0 : index
      %40 = vector.load %arg4[%c0_15, %c0_16, %c0_17] : memref<1x8x128xf32, #tpu.memory_space<vmem>>, vector<1x8x128xf32>
      %41 = vector.shape_cast %40 : vector<1x8x128xf32> to vector<8x128xf32>
      %42 = vector.shape_cast %39 : vector<8x128xf32> to vector<1x8x128xf32>
      tpu.vector_store %arg4[%c0_15, %c0_16, %c0_17], %42 {strides = array<i32>} : memref<1x8x128xf32, #tpu.memory_space<vmem>>, vector<1x8x128xf32>,
      %c0_18 = arith.constant 0 : index
      %c0_19 = arith.constant 0 : index
      %c0_20 = arith.constant 0 : index
      %43 = vector.load %arg5[%c0_18, %c0_19, %c0_20] : memref<1x8x128xf32, #tpu.memory_space<vmem>>, vector<1x8x128xf32>
      %44 = vector.shape_cast %43 : vector<1x8x128xf32> to vector<8x128xf32>
      %45 = vector.shape_cast %29 : vector<208x128xf32> to vector<26x8x128xf32>
      %cst_21 = arith.constant dense<0.000000e+00> : vector<8x128xf32>
      %46 = vector.multi_reduction <add>, %45, %cst_21 [0] : vector<26x8x128xf32> to vector<8x128xf32>
      %47 = arith.addf %44, %46 : vector<8x128xf32>
      %c0_22 = arith.constant 0 : index
      %c0_23 = arith.constant 0 : index
      %c0_24 = arith.constant 0 : index
      %48 = vector.load %arg5[%c0_22, %c0_23, %c0_24] : memref<1x8x128xf32, #tpu.memory_space<vmem>>, vector<1x8x128xf32>
      %49 = vector.shape_cast %48 : vector<1x8x128xf32> to vector<8x128xf32>
      %50 = vector.shape_cast %47 : vector<8x128xf32> to vector<1x8x128xf32>
      tpu.vector_store %arg5[%c0_22, %c0_23, %c0_24], %50 {strides = array<i32>} : memref<1x8x128xf32, #tpu.memory_space<vmem>>, vector<1x8x128xf32>,
      %c0_25 = arith.constant 0 : index
      %c0_26 = arith.constant 0 : index
      %c0_27 = arith.constant 0 : index
      %51 = vector.load %arg6[%c0_25, %c0_26, %c0_27] : memref<1x8x128xf32, #tpu.memory_space<vmem>>, vector<1x8x128xf32>
      %52 = vector.shape_cast %51 : vector<1x8x128xf32> to vector<8x128xf32>
      %53 = vector.shape_cast %33 : vector<208x128xf32> to vector<26x8x128xf32>
      %cst_28 = arith.constant dense<0.000000e+00> : vector<8x128xf32>
      %54 = vector.multi_reduction <add>, %53, %cst_28 [0] : vector<26x8x128xf32> to vector<8x128xf32>
      %55 = arith.addf %52, %54 : vector<8x128xf32>
      %c0_29 = arith.constant 0 : index
      %c0_30 = arith.constant 0 : index
      %c0_31 = arith.constant 0 : index
      %56 = vector.load %arg6[%c0_29, %c0_30, %c0_31] : memref<1x8x128xf32, #tpu.memory_space<vmem>>, vector<1x8x128xf32>
      %57 = vector.shape_cast %56 : vector<1x8x128xf32> to vector<8x128xf32>
      %58 = vector.shape_cast %55 : vector<8x128xf32> to vector<1x8x128xf32>
      tpu.vector_store %arg6[%c0_29, %c0_30, %c0_31], %58 {strides = array<i32>} : memref<1x8x128xf32, #tpu.memory_space<vmem>>, vector<1x8x128xf32>,
    } else {
    }
    %true = arith.constant true
    %17 = arith.xori %14, %true : i1
    %18 = arith.extui %17 : i1 to i32
    %c0_i32_8 = arith.constant 0 : i32
    %19 = arith.cmpi ne, %18, %c0_i32_8 : i32
    scf.if %19 {
      %c0_9 = arith.constant 0 : index
      %c0_10 = arith.constant 0 : index
      %c0_11 = arith.constant 0 : index
      %20 = vector.load %arg4[%c0_9, %c0_10, %c0_11] : memref<1x8x128xf32, #tpu.memory_space<vmem>>, vector<1x8x128xf32>
      %21 = vector.shape_cast %20 : vector<1x8x128xf32> to vector<8x128xf32>
      %22 = arith.mulf %11, %10 : vector<208x128xf32>
      %23 = vector.shape_cast %22 : vector<208x128xf32> to vector<26x8x128xf32>
      %cst_12 = arith.constant dense<0.000000e+00> : vector<8x128xf32>
      %24 = vector.multi_reduction <add>, %23, %cst_12 [0] : vector<26x8x128xf32> to vector<8x128xf32>
      %25 = arith.addf %21, %24 : vector<8x128xf32>
      %c0_13 = arith.constant 0 : index
      %c0_14 = arith.constant 0 : index
      %c0_15 = arith.constant 0 : index
      %26 = vector.load %arg4[%c0_13, %c0_14, %c0_15] : memref<1x8x128xf32, #tpu.memory_space<vmem>>, vector<1x8x128xf32>
      %27 = vector.shape_cast %26 : vector<1x8x128xf32> to vector<8x128xf32>
      %28 = vector.shape_cast %25 : vector<8x128xf32> to vector<1x8x128xf32>
      tpu.vector_store %arg4[%c0_13, %c0_14, %c0_15], %28 {strides = array<i32>} : memref<1x8x128xf32, #tpu.memory_space<vmem>>, vector<1x8x128xf32>,
      %c0_16 = arith.constant 0 : index
      %c0_17 = arith.constant 0 : index
      %c0_18 = arith.constant 0 : index
      %29 = vector.load %arg5[%c0_16, %c0_17, %c0_18] : memref<1x8x128xf32, #tpu.memory_space<vmem>>, vector<1x8x128xf32>
      %30 = vector.shape_cast %29 : vector<1x8x128xf32> to vector<8x128xf32>
      %31 = vector.shape_cast %11 : vector<208x128xf32> to vector<26x8x128xf32>
      %cst_19 = arith.constant dense<0.000000e+00> : vector<8x128xf32>
      %32 = vector.multi_reduction <add>, %31, %cst_19 [0] : vector<26x8x128xf32> to vector<8x128xf32>
      %33 = arith.addf %30, %32 : vector<8x128xf32>
      %c0_20 = arith.constant 0 : index
      %c0_21 = arith.constant 0 : index
      %c0_22 = arith.constant 0 : index
      %34 = vector.load %arg5[%c0_20, %c0_21, %c0_22] : memref<1x8x128xf32, #tpu.memory_space<vmem>>, vector<1x8x128xf32>
      %35 = vector.shape_cast %34 : vector<1x8x128xf32> to vector<8x128xf32>
      %36 = vector.shape_cast %33 : vector<8x128xf32> to vector<1x8x128xf32>
      tpu.vector_store %arg5[%c0_20, %c0_21, %c0_22], %36 {strides = array<i32>} : memref<1x8x128xf32, #tpu.memory_space<vmem>>, vector<1x8x128xf32>,
      %c0_23 = arith.constant 0 : index
      %c0_24 = arith.constant 0 : index
      %c0_25 = arith.constant 0 : index
      %37 = vector.load %arg6[%c0_23, %c0_24, %c0_25] : memref<1x8x128xf32, #tpu.memory_space<vmem>>, vector<1x8x128xf32>
      %38 = vector.shape_cast %37 : vector<1x8x128xf32> to vector<8x128xf32>
      %39 = vector.shape_cast %10 : vector<208x128xf32> to vector<26x8x128xf32>
      %cst_26 = arith.constant dense<0.000000e+00> : vector<8x128xf32>
      %40 = vector.multi_reduction <add>, %39, %cst_26 [0] : vector<26x8x128xf32> to vector<8x128xf32>
      %41 = arith.addf %38, %40 : vector<8x128xf32>
      %c0_27 = arith.constant 0 : index
      %c0_28 = arith.constant 0 : index
      %c0_29 = arith.constant 0 : index
      %42 = vector.load %arg6[%c0_27, %c0_28, %c0_29] : memref<1x8x128xf32, #tpu.memory_space<vmem>>, vector<1x8x128xf32>
      %43 = vector.shape_cast %42 : vector<1x8x128xf32> to vector<8x128xf32>
      %44 = vector.shape_cast %41 : vector<8x128xf32> to vector<1x8x128xf32>
      tpu.vector_store %arg6[%c0_27, %c0_28, %c0_29], %44 {strides = array<i32>} : memref<1x8x128xf32, #tpu.memory_space<vmem>>, vector<1x8x128xf32>,
    } else {
    }
    return
  }
  func.func @transform_0(%arg0: i32, %arg1: i32) -> (i32, i32) {
    %c1_i32 = arith.constant 1 : i32
    %0 = arith.muli %arg0, %c1_i32 : i32
    %1 = arith.addi %0, %arg1 : i32
    %c0_i32 = arith.constant 0 : i32
    %c0_i32_0 = arith.constant 0 : i32
    return %1, %c0_i32 : i32, i32
  }
  func.func @transform_1(%arg0: i32, %arg1: i32) -> (i32, i32) {
    %c1_i32 = arith.constant 1 : i32
    %0 = arith.muli %arg0, %c1_i32 : i32
    %1 = arith.addi %0, %arg1 : i32
    %c0_i32 = arith.constant 0 : i32
    %c0_i32_0 = arith.constant 0 : i32
    return %1, %c0_i32 : i32, i32
  }
  func.func @transform_2(%arg0: i32, %arg1: i32) -> (i32, i32, i32) {
    %c0_i32 = arith.constant 0 : i32
    %c0_i32_0 = arith.constant 0 : i32
    %c0_i32_1 = arith.constant 0 : i32
    return %arg0, %c0_i32, %c0_i32_0 : i32, i32, i32
  }
  func.func @transform_3(%arg0: i32, %arg1: i32) -> (i32, i32, i32) {
    %c0_i32 = arith.constant 0 : i32
    %c0_i32_0 = arith.constant 0 : i32
    %c0_i32_1 = arith.constant 0 : i32
    return %arg0, %c0_i32, %c0_i32_0 : i32, i32, i32
  }
  func.func @transform_4(%arg0: i32, %arg1: i32) -> (i32, i32, i32) {
    %c0_i32 = arith.constant 0 : i32
    %c0_i32_0 = arith.constant 0 : i32
    %c0_i32_1 = arith.constant 0 : i32
    return %arg0, %c0_i32, %c0_i32_0 : i32, i32, i32
  }
}

</mosaic_0001>

<llo_original>
// kernel: tpu_custom_call.1
$region0: #{tpu_custom_call.1}
  #allocation0 [shape = 'u32[]', space=smem, size = 0x4, offset = 0x4, fixed_abs, tag = 'smem constant byte address 0x4 - core index']
  #allocation1 [shape = 'u32[72,128]{1,0:T(1,128)}', space=vmem, size = 0x9000, scoped, tag = 'internal scratch']
  %s0 = inlined_call_operand.hbm [shape: f32[203,128], index: 0, kind: input, shape index: {}]
  %s1 = inlined_call_operand.hbm [shape: f32[203,128], index: 1, kind: input, shape index: {}]
  %s2 = inlined_call_operand.hbm [shape: f32[1,8,128], index: 2, kind: output, shape index: {0}]
  %s3 = inlined_call_operand.hbm [shape: f32[1,8,128], index: 3, kind: output, shape index: {1}]
  %s4 = inlined_call_operand.hbm [shape: f32[1,8,128], index: 4, kind: output, shape index: {2}]
  %5 = xla_tuple %s2, %s3, %s4
  %s6 = sld [smem:[#allocation0]]
  $region54: #{tpu_custom_call.1} parent=0
    _
  %s8 = ssub.s32 1, %s6
  %s9 = scalar_select 0, %s8, %s6
  $region1: #{tpu_custom_call.1} parent=0
    #allocation2 [shape = 'u8[106496]{0}', space=vmem, size = 0x1a000, scoped, tag = 'input window, operand 0, single buffered']
    #allocation3 [shape = 's32[1]{0}', space=sflag, size = 0x4, scoped, tag = 'scoped memory for tpu_custom_call.1']
    #allocation4 [shape = 's32[1]{0}', space=sflag, size = 0x4, scoped, tag = 'scoped memory for tpu_custom_call.1']
    #allocation5 [shape = 'u8[106496]{0}', space=vmem, size = 0x1a000, scoped, tag = 'input window, operand 1, single buffered']
    #allocation6 [shape = 's32[1]{0}', space=sflag, size = 0x4, scoped, tag = 'scoped memory for tpu_custom_call.1']
    #allocation7 [shape = 'u8[4096]{0}', space=vmem, size = 0x1000, scoped, tag = 'output window, operand 0, single buffered']
    #allocation8 [shape = 'u8[4096]{0}', space=vmem, size = 0x1000, scoped, tag = 'output window, operand 1, single buffered']
    #allocation9 [shape = 's32[1]{0}', space=sflag, size = 0x4, scoped, tag = 'scoped memory for tpu_custom_call.1']
    #allocation10 [shape = 'u8[4096]{0}', space=vmem, size = 0x1000, scoped, tag = 'output window, operand 2, single buffered']
    %10 = vsyncpa [#allocation3], 0
    %11 = vsyncpa [#allocation6], 0
    %12 = vsyncpa [#allocation4], 0
    %13 = vsyncpa [#allocation9], 0
    // Predicated region
    $region2: #{tpu_custom_call.1} parent=1 // pred_check
      _
    $region3: #{tpu_custom_call.1} parent=1 // pred_check_branch
      %15 = sbr.rel (0) target = $region5
    $region4: #{tpu_custom_call.1} parent=1 // pred_region
      %s16 = sadd.s32 0, 0
      %s17 = smul.u32 26, %s16
      %19 = vsyncadd [#allocation3], 0
      %s20 = smul.addr %s17, 8
      %s21 = scalar_lea.hbm %s0, %s20
      %s22 = sshll.u32 %s21, 4
      %s23 = int_to_ptr.hbm [resolvable:$true] %s22
      %s24 = sshll.u32 [#allocation2], 4
      %s25 = int_to_ptr.vmem [resolvable:$true] %s24
      %30 = dma.hbm_to_vmem [thread:$0]  %s23, 3328, %s25, [#allocation3], 128, 128, 8
    $region5: #{tpu_custom_call.1} parent=1 // pred_fallthru
      _
    // Predicated region
    $region6: #{tpu_custom_call.1} parent=1 // pred_check
      _
    $region7: #{tpu_custom_call.1} parent=1 // pred_check_branch
      %32 = sbr.rel (0) target = $region9
    $region8: #{tpu_custom_call.1} parent=1 // pred_region
      %s33 = sadd.s32 0, 0
      %s34 = smul.u32 26, %s33
      %36 = vsyncadd [#allocation6], 0
      %s37 = smul.addr %s34, 8
      %s38 = scalar_lea.hbm %s1, %s37
      %s39 = sshll.u32 %s38, 4
      %s40 = int_to_ptr.hbm [resolvable:$true] %s39
      %s41 = sshll.u32 [#allocation5], 4
      %s42 = int_to_ptr.vmem [resolvable:$true] %s41
      %47 = dma.hbm_to_vmem [thread:$0]  %s40, 3328, %s42, [#allocation6], 128, 128, 8
    $region9: #{tpu_custom_call.1} parent=1 // pred_fallthru
      _
    // Predicated region
    $region10: #{tpu_custom_call.1} parent=1 // pred_check
      _
    $region11: #{tpu_custom_call.1} parent=1 // pred_check_branch
      %49 = sbr.rel (0) target = $region13
    $region12: #{tpu_custom_call.1} parent=1 // pred_region
      %51 = dma.done [#allocation3], 3328
    $region13: #{tpu_custom_call.1} parent=1 // pred_fallthru
      _
    // Predicated region
    $region14: #{tpu_custom_call.1} parent=1 // pred_check
      _
    $region15: #{tpu_custom_call.1} parent=1 // pred_check_branch
      %53 = sbr.rel (0) target = $region17
    $region16: #{tpu_custom_call.1} parent=1 // pred_region
      %55 = dma.done [#allocation6], 3328
    $region17: #{tpu_custom_call.1} parent=1 // pred_fallthru
      _
    %s56 = sadd.s32 0, 0
    %s57 = smul.u32 26, %s56
    %s58 = sadd.s32 0, 0
    %s59 = smul.u32 26, %s58
    %p60 = scmp.eq.s32.totalorder 0, 0
    // Predicated region
    $region18: #{tpu_custom_call.1} parent=1 // pred_check
      %p61 = pneg %p60
    $region19: #{tpu_custom_call.1} parent=1 // pred_check_branch
      %63 = sbr.rel (%p61) target = $region21
    $region20: #{tpu_custom_call.1} parent=1 // pred_region
      %64 = vst [vmem:[#allocation7] sm:$0xff] 0.0
      %65 = vst [vmem:[#allocation8] sm:$0xff] 0.0
      %66 = vst [vmem:[#allocation10] sm:$0xff] 0.0
    $region21: #{tpu_custom_call.1} parent=1 // pred_fallthru
      _
    %v67 = vld [vmem:[#allocation2] sm:$0xff]
    %v68 = vld [vmem:[#allocation2 + $0x8] sm:$0xff]
    %v69 = vld [vmem:[#allocation2 + $0x10] sm:$0xff]
    %v70 = vld [vmem:[#allocation2 + $0x18] sm:$0xff]
    %v71 = vld [vmem:[#allocation2 + $0x20] sm:$0xff]
    %v72 = vld [vmem:[#allocation2 + $0x28] sm:$0xff]
    %v73 = vld [vmem:[#allocation2 + $0x30] sm:$0xff]
    %v74 = vld [vmem:[#allocation2 + $0x38] sm:$0xff]
    %v75 = vld [vmem:[#allocation2 + $0x40] sm:$0xff]
    %v76 = vld [vmem:[#allocation2 + $0x48] sm:$0xff]
    %v77 = vld [vmem:[#allocation2 + $0x50] sm:$0xff]
    %v78 = vld [vmem:[#allocation2 + $0x58] sm:$0xff]
    %v79 = vld [vmem:[#allocation2 + $0x60] sm:$0xff]
    %v80 = vld [vmem:[#allocation2 + $0x68] sm:$0xff]
    %v81 = vld [vmem:[#allocation2 + $0x70] sm:$0xff]
    %v82 = vld [vmem:[#allocation2 + $0x78] sm:$0xff]
    %v83 = vld [vmem:[#allocation2 + $0x80] sm:$0xff]
    %v84 = vld [vmem:[#allocation2 + $0x88] sm:$0xff]
    %v85 = vld [vmem:[#allocation2 + $0x90] sm:$0xff]
    %v86 = vld [vmem:[#allocation2 + $0x98] sm:$0xff]
    %v87 = vld [vmem:[#allocation2 + $0xa0] sm:$0xff]
    %v88 = vld [vmem:[#allocation2 + $0xa8] sm:$0xff]
    %v89 = vld [vmem:[#allocation2 + $0xb0] sm:$0xff]
    %v90 = vld [vmem:[#allocation2 + $0xb8] sm:$0xff]
    %v91 = vld [vmem:[#allocation2 + $0xc0] sm:$0xff]
    %v92 = vld [vmem:[#allocation2 + $0xc8] sm:$0xff]
    %v93 = vmul.f32 %v67, 0.5
    %v94 = vmul.f32 %v68, 0.5
    %v95 = vmul.f32 %v69, 0.5
    %v96 = vmul.f32 %v70, 0.5
    %v97 = vmul.f32 %v71, 0.5
    %v98 = vmul.f32 %v72, 0.5
    %v99 = vmul.f32 %v73, 0.5
    %v100 = vmul.f32 %v74, 0.5
    %v101 = vmul.f32 %v75, 0.5
    %v102 = vmul.f32 %v76, 0.5
    %v103 = vmul.f32 %v77, 0.5
    %v104 = vmul.f32 %v78, 0.5
    %v105 = vmul.f32 %v79, 0.5
    %v106 = vmul.f32 %v80, 0.5
    %v107 = vmul.f32 %v81, 0.5
    %v108 = vmul.f32 %v82, 0.5
    %v109 = vmul.f32 %v83, 0.5
    %v110 = vmul.f32 %v84, 0.5
    %v111 = vmul.f32 %v85, 0.5
    %v112 = vmul.f32 %v86, 0.5
    %v113 = vmul.f32 %v87, 0.5
    %v114 = vmul.f32 %v88, 0.5
    %v115 = vmul.f32 %v89, 0.5
    %v116 = vmul.f32 %v90, 0.5
    %v117 = vmul.f32 %v91, 0.5
    %v118 = vmul.f32 %v92, 0.5
    %v119 = vtanh.pop %v93
    %v120 = vtanh.pop %v94
    %v121 = vtanh.pop %v95
    %v122 = vtanh.pop %v96
    %v123 = vtanh.pop %v97
    %v124 = vtanh.pop %v98
    %v125 = vtanh.pop %v99
    %v126 = vtanh.pop %v100
    %v127 = vtanh.pop %v101
    %v128 = vtanh.pop %v102
    %v129 = vtanh.pop %v103
    %v130 = vtanh.pop %v104
    %v131 = vtanh.pop %v105
    %v132 = vtanh.pop %v106
    %v133 = vtanh.pop %v107
    %v134 = vtanh.pop %v108
    %v135 = vtanh.pop %v109
    %v136 = vtanh.pop %v110
    %v137 = vtanh.pop %v111
    %v138 = vtanh.pop %v112
    %v139 = vtanh.pop %v113
    %v140 = vtanh.pop %v114
    %v141 = vtanh.pop %v115
    %v142 = vtanh.pop %v116
    %v143 = vtanh.pop %v117
    %v144 = vtanh.pop %v118
    %v145 = vmul.f32 %v119, 0.5
    %v146 = vmul.f32 %v120, 0.5
    %v147 = vmul.f32 %v121, 0.5
    %v148 = vmul.f32 %v122, 0.5
    %v149 = vmul.f32 %v123, 0.5
    %v150 = vmul.f32 %v124, 0.5
    %v151 = vmul.f32 %v125, 0.5
    %v152 = vmul.f32 %v126, 0.5
    %v153 = vmul.f32 %v127, 0.5
    %v154 = vmul.f32 %v128, 0.5
    %v155 = vmul.f32 %v129, 0.5
    %v156 = vmul.f32 %v130, 0.5
    %v157 = vmul.f32 %v131, 0.5
    %v158 = vmul.f32 %v132, 0.5
    %v159 = vmul.f32 %v133, 0.5
    %v160 = vmul.f32 %v134, 0.5
    %v161 = vmul.f32 %v135, 0.5
    %v162 = vmul.f32 %v136, 0.5
    %v163 = vmul.f32 %v137, 0.5
    %v164 = vmul.f32 %v138, 0.5
    %v165 = vmul.f32 %v139, 0.5
    %v166 = vmul.f32 %v140, 0.5
    %v167 = vmul.f32 %v141, 0.5
    %v168 = vmul.f32 %v142, 0.5
    %v169 = vmul.f32 %v143, 0.5
    %v170 = vmul.f32 %v144, 0.5
    %v171 = vadd.f32 %v145, 0.5
    %v172 = vadd.f32 %v146, 0.5
    %v173 = vadd.f32 %v147, 0.5
    %v174 = vadd.f32 %v148, 0.5
    %v175 = vadd.f32 %v149, 0.5
    %v176 = vadd.f32 %v150, 0.5
    %v177 = vadd.f32 %v151, 0.5
    %v178 = vadd.f32 %v152, 0.5
    %v179 = vadd.f32 %v153, 0.5
    %v180 = vadd.f32 %v154, 0.5
    %v181 = vadd.f32 %v155, 0.5
    %v182 = vadd.f32 %v156, 0.5
    %v183 = vadd.f32 %v157, 0.5
    %v184 = vadd.f32 %v158, 0.5
    %v185 = vadd.f32 %v159, 0.5
    %v186 = vadd.f32 %v160, 0.5
    %v187 = vadd.f32 %v161, 0.5
    %v188 = vadd.f32 %v162, 0.5
    %v189 = vadd.f32 %v163, 0.5
    %v190 = vadd.f32 %v164, 0.5
    %v191 = vadd.f32 %v165, 0.5
    %v192 = vadd.f32 %v166, 0.5
    %v193 = vadd.f32 %v167, 0.5
    %v194 = vadd.f32 %v168, 0.5
    %v195 = vadd.f32 %v169, 0.5
    %v196 = vadd.f32 %v170, 0.5
    %v197 = vld [vmem:[#allocation5] sm:$0xff]
    %v198 = vld [vmem:[#allocation5 + $0x8] sm:$0xff]
    %v199 = vld [vmem:[#allocation5 + $0x10] sm:$0xff]
    %v200 = vld [vmem:[#allocation5 + $0x18] sm:$0xff]
    %v201 = vld [vmem:[#allocation5 + $0x20] sm:$0xff]
    %v202 = vld [vmem:[#allocation5 + $0x28] sm:$0xff]
    %v203 = vld [vmem:[#allocation5 + $0x30] sm:$0xff]
    %v204 = vld [vmem:[#allocation5 + $0x38] sm:$0xff]
    %v205 = vld [vmem:[#allocation5 + $0x40] sm:$0xff]
    %v206 = vld [vmem:[#allocation5 + $0x48] sm:$0xff]
    %v207 = vld [vmem:[#allocation5 + $0x50] sm:$0xff]
    %v208 = vld [vmem:[#allocation5 + $0x58] sm:$0xff]
    %v209 = vld [vmem:[#allocation5 + $0x60] sm:$0xff]
    %v210 = vld [vmem:[#allocation5 + $0x68] sm:$0xff]
    %v211 = vld [vmem:[#allocation5 + $0x70] sm:$0xff]
    %v212 = vld [vmem:[#allocation5 + $0x78] sm:$0xff]
    %v213 = vld [vmem:[#allocation5 + $0x80] sm:$0xff]
    %v214 = vld [vmem:[#allocation5 + $0x88] sm:$0xff]
    %v215 = vld [vmem:[#allocation5 + $0x90] sm:$0xff]
    %v216 = vld [vmem:[#allocation5 + $0x98] sm:$0xff]
    %v217 = vld [vmem:[#allocation5 + $0xa0] sm:$0xff]
    %v218 = vld [vmem:[#allocation5 + $0xa8] sm:$0xff]
    %v219 = vld [vmem:[#allocation5 + $0xb0] sm:$0xff]
    %v220 = vld [vmem:[#allocation5 + $0xb8] sm:$0xff]
    %v221 = vld [vmem:[#allocation5 + $0xc0] sm:$0xff]
    %v222 = vld [vmem:[#allocation5 + $0xc8] sm:$0xff]
    %s223 = sadd.s32 0, 0
    %p224 = scmp.ge.s32.totalorder %s223, 0
    // Predicated region
    $region22: #{tpu_custom_call.1} parent=1 // pred_check
      %p225 = pneg %p224
    $region23: #{tpu_custom_call.1} parent=1 // pred_check_branch
      %227 = sbr.rel (%p225) target = $region25
    $region24: #{tpu_custom_call.1} parent=1 // pred_region
      %s228 = smul.u32 %s223, 208
      %v229 = vlaneseq
      %v230 = vshrl.u32 %v229, 7
      %v231 = vadd.s32 %v230, 8
      %v232 = vadd.s32 %v230, 16
      %v233 = vadd.s32 %v230, 24
      %v234 = vadd.s32 %v230, 32
      %v235 = vadd.s32 %v230, 40
      %v236 = vadd.s32 %v230, 48
      %v237 = vadd.s32 %v230, 56
      %v238 = vadd.s32 %v230, 64
      %v239 = vadd.s32 %v230, 72
      %v240 = vadd.s32 %v230, 80
      %v241 = vadd.s32 %v230, 88
      %v242 = vadd.s32 %v230, 96
      %v243 = vadd.s32 %v230, 104
      %v244 = vadd.s32 %v230, 112
      %v245 = vadd.s32 %v230, 120
      %v246 = vadd.s32 %v230, 128
      %v247 = vadd.s32 %v230, 136
      %v248 = vadd.s32 %v230, 144
      %v249 = vadd.s32 %v230, 152
      %v250 = vadd.s32 %v230, 160
      %v251 = vadd.s32 %v230, 168
      %v252 = vadd.s32 %v230, 176
      %v253 = vadd.s32 %v230, 184
      %v254 = vadd.s32 %v230, 192
      %v255 = vadd.s32 %v230, 200
      %v256 = vstv %s228
      %v257 = vadd.s32 %v256, %v230
      %v258 = vadd.s32 %v256, %v231
      %v259 = vadd.s32 %v256, %v232
      %v260 = vadd.s32 %v256, %v233
      %v261 = vadd.s32 %v256, %v234
      %v262 = vadd.s32 %v256, %v235
      %v263 = vadd.s32 %v256, %v236
      %v264 = vadd.s32 %v256, %v237
      %v265 = vadd.s32 %v256, %v238
      %v266 = vadd.s32 %v256, %v239
      %v267 = vadd.s32 %v256, %v240
      %v268 = vadd.s32 %v256, %v241
      %v269 = vadd.s32 %v256, %v242
      %v270 = vadd.s32 %v256, %v243
      %v271 = vadd.s32 %v256, %v244
      %v272 = vadd.s32 %v256, %v245
      %v273 = vadd.s32 %v256, %v246
      %v274 = vadd.s32 %v256, %v247
      %v275 = vadd.s32 %v256, %v248
      %v276 = vadd.s32 %v256, %v249
      %v277 = vadd.s32 %v256, %v250
      %v278 = vadd.s32 %v256, %v251
      %v279 = vadd.s32 %v256, %v252
      %v280 = vadd.s32 %v256, %v253
      %v281 = vadd.s32 %v256, %v254
      %v282 = vadd.s32 %v256, %v255
      %vm283 = vcmp.lt.s32.totalorder %v257, 203
      %vm284 = vcmp.lt.s32.totalorder %v258, 203
      %vm285 = vcmp.lt.s32.totalorder %v259, 203
      %vm286 = vcmp.lt.s32.totalorder %v260, 203
      %vm287 = vcmp.lt.s32.totalorder %v261, 203
      %vm288 = vcmp.lt.s32.totalorder %v262, 203
      %vm289 = vcmp.lt.s32.totalorder %v263, 203
      %vm290 = vcmp.lt.s32.totalorder %v264, 203
      %vm291 = vcmp.lt.s32.totalorder %v265, 203
      %vm292 = vcmp.lt.s32.totalorder %v266, 203
      %vm293 = vcmp.lt.s32.totalorder %v267, 203
      %vm294 = vcmp.lt.s32.totalorder %v268, 203
      %vm295 = vcmp.lt.s32.totalorder %v269, 203
      %vm296 = vcmp.lt.s32.totalorder %v270, 203
      %vm297 = vcmp.lt.s32.totalorder %v271, 203
      %vm298 = vcmp.lt.s32.totalorder %v272, 203
      %vm299 = vcmp.lt.s32.totalorder %v273, 203
      %vm300 = vcmp.lt.s32.totalorder %v274, 203
      %vm301 = vcmp.lt.s32.totalorder %v275, 203
      %vm302 = vcmp.lt.s32.totalorder %v276, 203
      %vm303 = vcmp.lt.s32.totalorder %v277, 203
      %vm304 = vcmp.lt.s32.totalorder %v278, 203
      %vm305 = vcmp.lt.s32.totalorder %v279, 203
      %vm306 = vcmp.lt.s32.totalorder %v280, 203
      %vm307 = vcmp.lt.s32.totalorder %v281, 203
      %vm308 = vcmp.lt.s32.totalorder %v282, 203
      %v309 = vsel %vm283, 1, 0
      %v310 = vsel %vm284, 1, 0
      %v311 = vsel %vm285, 1, 0
      %v312 = vsel %vm286, 1, 0
      %v313 = vsel %vm287, 1, 0
      %v314 = vsel %vm288, 1, 0
      %v315 = vsel %vm289, 1, 0
      %v316 = vsel %vm290, 1, 0
      %v317 = vsel %vm291, 1, 0
      %v318 = vsel %vm292, 1, 0
      %v319 = vsel %vm293, 1, 0
      %v320 = vsel %vm294, 1, 0
      %v321 = vsel %vm295, 1, 0
      %v322 = vsel %vm296, 1, 0
      %v323 = vsel %vm297, 1, 0
      %v324 = vsel %vm298, 1, 0
      %v325 = vsel %vm299, 1, 0
      %v326 = vsel %vm300, 1, 0
      %v327 = vsel %vm301, 1, 0
      %v328 = vsel %vm302, 1, 0
      %v329 = vsel %vm303, 1, 0
      %v330 = vsel %vm304, 1, 0
      %v331 = vsel %vm305, 1, 0
      %v332 = vsel %vm306, 1, 0
      %v333 = vsel %vm307, 1, 0
      %v334 = vsel %vm308, 1, 0
      %vm335 = vcmp.eq.s32.totalorder %v309, 1
      %vm336 = vcmp.eq.s32.totalorder %v310, 1
      %vm337 = vcmp.eq.s32.totalorder %v311, 1
      %vm338 = vcmp.eq.s32.totalorder %v312, 1
      %vm339 = vcmp.eq.s32.totalorder %v313, 1
      %vm340 = vcmp.eq.s32.totalorder %v314, 1
      %vm341 = vcmp.eq.s32.totalorder %v315, 1
      %vm342 = vcmp.eq.s32.totalorder %v316, 1
      %vm343 = vcmp.eq.s32.totalorder %v317, 1
      %vm344 = vcmp.eq.s32.totalorder %v318, 1
      %vm345 = vcmp.eq.s32.totalorder %v319, 1
      %vm346 = vcmp.eq.s32.totalorder %v320, 1
      %vm347 = vcmp.eq.s32.totalorder %v321, 1
      %vm348 = vcmp.eq.s32.totalorder %v322, 1
      %vm349 = vcmp.eq.s32.totalorder %v323, 1
      %vm350 = vcmp.eq.s32.totalorder %v324, 1
      %vm351 = vcmp.eq.s32.totalorder %v325, 1
      %vm352 = vcmp.eq.s32.totalorder %v326, 1
      %vm353 = vcmp.eq.s32.totalorder %v327, 1
      %vm354 = vcmp.eq.s32.totalorder %v328, 1
      %vm355 = vcmp.eq.s32.totalorder %v329, 1
      %vm356 = vcmp.eq.s32.totalorder %v330, 1
      %vm357 = vcmp.eq.s32.totalorder %v331, 1
      %vm358 = vcmp.eq.s32.totalorder %v332, 1
      %vm359 = vcmp.eq.s32.totalorder %v333, 1
      %vm360 = vcmp.eq.s32.totalorder %v334, 1
      %v361 = vsel %vm335, %v197, 0.0
      %v362 = vsel %vm336, %v198, 0.0
      %v363 = vsel %vm337, %v199, 0.0
      %v364 = vsel %vm338, %v200, 0.0
      %v365 = vsel %vm339, %v201, 0.0
      %v366 = vsel %vm340, %v202, 0.0
      %v367 = vsel %vm341, %v203, 0.0
      %v368 = vsel %vm342, %v204, 0.0
      %v369 = vsel %vm343, %v205, 0.0
      %v370 = vsel %vm344, %v206, 0.0
      %v371 = vsel %vm345, %v207, 0.0
      %v372 = vsel %vm346, %v208, 0.0
      %v373 = vsel %vm347, %v209, 0.0
      %v374 = vsel %vm348, %v210, 0.0
      %v375 = vsel %vm349, %v211, 0.0
      %v376 = vsel %vm350, %v212, 0.0
      %v377 = vsel %vm351, %v213, 0.0
      %v378 = vsel %vm352, %v214, 0.0
      %v379 = vsel %vm353, %v215, 0.0
      %v380 = vsel %vm354, %v216, 0.0
      %v381 = vsel %vm355, %v217, 0.0
      %v382 = vsel %vm356, %v218, 0.0
      %v383 = vsel %vm357, %v219, 0.0
      %v384 = vsel %vm358, %v220, 0.0
      %v385 = vsel %vm359, %v221, 0.0
      %v386 = vsel %vm360, %v222, 0.0
      %v387 = vsel %vm335, %v171, 0.0
      %v388 = vsel %vm336, %v172, 0.0
      %v389 = vsel %vm337, %v173, 0.0
      %v390 = vsel %vm338, %v174, 0.0
      %v391 = vsel %vm339, %v175, 0.0
      %v392 = vsel %vm340, %v176, 0.0
      %v393 = vsel %vm341, %v177, 0.0
      %v394 = vsel %vm342, %v178, 0.0
      %v395 = vsel %vm343, %v179, 0.0
      %v396 = vsel %vm344, %v180, 0.0
      %v397 = vsel %vm345, %v181, 0.0
      %v398 = vsel %vm346, %v182, 0.0
      %v399 = vsel %vm347, %v183, 0.0
      %v400 = vsel %vm348, %v184, 0.0
      %v401 = vsel %vm349, %v185, 0.0
      %v402 = vsel %vm350, %v186, 0.0
      %v403 = vsel %vm351, %v187, 0.0
      %v404 = vsel %vm352, %v188, 0.0
      %v405 = vsel %vm353, %v189, 0.0
      %v406 = vsel %vm354, %v190, 0.0
      %v407 = vsel %vm355, %v191, 0.0
      %v408 = vsel %vm356, %v192, 0.0
      %v409 = vsel %vm357, %v193, 0.0
      %v410 = vsel %vm358, %v194, 0.0
      %v411 = vsel %vm359, %v195, 0.0
      %v412 = vsel %vm360, %v196, 0.0
      %v413 = vld [vmem:[#allocation7] sm:$0xff]
      %v414 = vmul.f32 %v361, %v387
      %v415 = vmul.f32 %v362, %v388
      %v416 = vmul.f32 %v363, %v389
      %v417 = vmul.f32 %v364, %v390
      %v418 = vmul.f32 %v365, %v391
      %v419 = vmul.f32 %v366, %v392
      %v420 = vmul.f32 %v367, %v393
      %v421 = vmul.f32 %v368, %v394
      %v422 = vmul.f32 %v369, %v395
      %v423 = vmul.f32 %v370, %v396
      %v424 = vmul.f32 %v371, %v397
      %v425 = vmul.f32 %v372, %v398
      %v426 = vmul.f32 %v373, %v399
      %v427 = vmul.f32 %v374, %v400
      %v428 = vmul.f32 %v375, %v401
      %v429 = vmul.f32 %v376, %v402
      %v430 = vmul.f32 %v377, %v403
      %v431 = vmul.f32 %v378, %v404
      %v432 = vmul.f32 %v379, %v405
      %v433 = vmul.f32 %v380, %v406
      %v434 = vmul.f32 %v381, %v407
      %v435 = vmul.f32 %v382, %v408
      %v436 = vmul.f32 %v383, %v409
      %v437 = vmul.f32 %v384, %v410
      %v438 = vmul.f32 %v385, %v411
      %v439 = vmul.f32 %v386, %v412
      %v440 = vadd.f32 %v414, %v415
      %v441 = vadd.f32 %v440, %v416
      %v442 = vadd.f32 %v441, %v417
      %v443 = vadd.f32 %v442, %v418
      %v444 = vadd.f32 %v443, %v419
      %v445 = vadd.f32 %v444, %v420
      %v446 = vadd.f32 %v445, %v421
      %v447 = vadd.f32 %v446, %v422
      %v448 = vadd.f32 %v447, %v423
      %v449 = vadd.f32 %v448, %v424
      %v450 = vadd.f32 %v449, %v425
      %v451 = vadd.f32 %v450, %v426
      %v452 = vadd.f32 %v451, %v427
      %v453 = vadd.f32 %v452, %v428
      %v454 = vadd.f32 %v453, %v429
      %v455 = vadd.f32 %v454, %v430
      %v456 = vadd.f32 %v455, %v431
      %v457 = vadd.f32 %v456, %v432
      %v458 = vadd.f32 %v457, %v433
      %v459 = vadd.f32 %v458, %v434
      %v460 = vadd.f32 %v459, %v435
      %v461 = vadd.f32 %v460, %v436
      %v462 = vadd.f32 %v461, %v437
      %v463 = vadd.f32 %v462, %v438
      %v464 = vadd.f32 %v463, %v439
      %v465 = vadd.f32 %v413, %v464
      %466 = vst [vmem:[#allocation7] sm:$0xff] %v465
      %v467 = vld [vmem:[#allocation8] sm:$0xff]
      %v468 = vadd.f32 %v361, %v362
      %v469 = vadd.f32 %v468, %v363
      %v470 = vadd.f32 %v469, %v364
      %v471 = vadd.f32 %v470, %v365
      %v472 = vadd.f32 %v471, %v366
      %v473 = vadd.f32 %v472, %v367
      %v474 = vadd.f32 %v473, %v368
      %v475 = vadd.f32 %v474, %v369
      %v476 = vadd.f32 %v475, %v370
      %v477 = vadd.f32 %v476, %v371
      %v478 = vadd.f32 %v477, %v372
      %v479 = vadd.f32 %v478, %v373
      %v480 = vadd.f32 %v479, %v374
      %v481 = vadd.f32 %v480, %v375
      %v482 = vadd.f32 %v481, %v376
      %v483 = vadd.f32 %v482, %v377
      %v484 = vadd.f32 %v483, %v378
      %v485 = vadd.f32 %v484, %v379
      %v486 = vadd.f32 %v485, %v380
      %v487 = vadd.f32 %v486, %v381
      %v488 = vadd.f32 %v487, %v382
      %v489 = vadd.f32 %v488, %v383
      %v490 = vadd.f32 %v489, %v384
      %v491 = vadd.f32 %v490, %v385
      %v492 = vadd.f32 %v491, %v386
      %v493 = vadd.f32 %v467, %v492
      %494 = vst [vmem:[#allocation8] sm:$0xff] %v493
      %v495 = vld [vmem:[#allocation10] sm:$0xff]
      %v496 = vadd.f32 %v387, %v388
      %v497 = vadd.f32 %v496, %v389
      %v498 = vadd.f32 %v497, %v390
      %v499 = vadd.f32 %v498, %v391
      %v500 = vadd.f32 %v499, %v392
      %v501 = vadd.f32 %v500, %v393
      %v502 = vadd.f32 %v501, %v394
      %v503 = vadd.f32 %v502, %v395
      %v504 = vadd.f32 %v503, %v396
      %v505 = vadd.f32 %v504, %v397
      %v506 = vadd.f32 %v505, %v398
      %v507 = vadd.f32 %v506, %v399
      %v508 = vadd.f32 %v507, %v400
      %v509 = vadd.f32 %v508, %v401
      %v510 = vadd.f32 %v509, %v402
      %v511 = vadd.f32 %v510, %v403
      %v512 = vadd.f32 %v511, %v404
      %v513 = vadd.f32 %v512, %v405
      %v514 = vadd.f32 %v513, %v406
      %v515 = vadd.f32 %v514, %v407
      %v516 = vadd.f32 %v515, %v408
      %v517 = vadd.f32 %v516, %v409
      %v518 = vadd.f32 %v517, %v410
      %v519 = vadd.f32 %v518, %v411
      %v520 = vadd.f32 %v519, %v412
      %v521 = vadd.f32 %v495, %v520
      %522 = vst [vmem:[#allocation10] sm:$0xff] %v521
    $region25: #{tpu_custom_call.1} parent=1 // pred_fallthru
      _
    %p523 = scmp.lt.s32.totalorder %s223, 0
    // Predicated region
    $region26: #{tpu_custom_call.1} parent=1 // pred_check
      %p524 = pneg %p523
    $region27: #{tpu_custom_call.1} parent=1 // pred_check_branch
      %526 = sbr.rel (%p524) target = $region29
    $region28: #{tpu_custom_call.1} parent=1 // pred_region
      %v527 = vld [vmem:[#allocation7] sm:$0xff]
      %v528 = vmul.f32 %v197, %v171
      %v529 = vmul.f32 %v198, %v172
      %v530 = vmul.f32 %v199, %v173
      %v531 = vmul.f32 %v200, %v174
      %v532 = vmul.f32 %v201, %v175
      %v533 = vmul.f32 %v202, %v176
      %v534 = vmul.f32 %v203, %v177
      %v535 = vmul.f32 %v204, %v178
      %v536 = vmul.f32 %v205, %v179
      %v537 = vmul.f32 %v206, %v180
      %v538 = vmul.f32 %v207, %v181
      %v539 = vmul.f32 %v208, %v182
      %v540 = vmul.f32 %v209, %v183
      %v541 = vmul.f32 %v210, %v184
      %v542 = vmul.f32 %v211, %v185
      %v543 = vmul.f32 %v212, %v186
      %v544 = vmul.f32 %v213, %v187
      %v545 = vmul.f32 %v214, %v188
      %v546 = vmul.f32 %v215, %v189
      %v547 = vmul.f32 %v216, %v190
      %v548 = vmul.f32 %v217, %v191
      %v549 = vmul.f32 %v218, %v192
      %v550 = vmul.f32 %v219, %v193
      %v551 = vmul.f32 %v220, %v194
      %v552 = vmul.f32 %v221, %v195
      %v553 = vmul.f32 %v222, %v196
      %v554 = vadd.f32 %v528, %v529
      %v555 = vadd.f32 %v554, %v530
      %v556 = vadd.f32 %v555, %v531
      %v557 = vadd.f32 %v556, %v532
      %v558 = vadd.f32 %v557, %v533
      %v559 = vadd.f32 %v558, %v534
      %v560 = vadd.f32 %v559, %v535
      %v561 = vadd.f32 %v560, %v536
      %v562 = vadd.f32 %v561, %v537
      %v563 = vadd.f32 %v562, %v538
      %v564 = vadd.f32 %v563, %v539
      %v565 = vadd.f32 %v564, %v540
      %v566 = vadd.f32 %v565, %v541
      %v567 = vadd.f32 %v566, %v542
      %v568 = vadd.f32 %v567, %v543
      %v569 = vadd.f32 %v568, %v544
      %v570 = vadd.f32 %v569, %v545
      %v571 = vadd.f32 %v570, %v546
      %v572 = vadd.f32 %v571, %v547
      %v573 = vadd.f32 %v572, %v548
      %v574 = vadd.f32 %v573, %v549
      %v575 = vadd.f32 %v574, %v550
      %v576 = vadd.f32 %v575, %v551
      %v577 = vadd.f32 %v576, %v552
      %v578 = vadd.f32 %v577, %v553
      %v579 = vadd.f32 %v527, %v578
      %580 = vst [vmem:[#allocation7] sm:$0xff] %v579
      %v581 = vld [vmem:[#allocation8] sm:$0xff]
      %v582 = vadd.f32 %v197, %v198
      %v583 = vadd.f32 %v582, %v199
      %v584 = vadd.f32 %v583, %v200
      %v585 = vadd.f32 %v584, %v201
      %v586 = vadd.f32 %v585, %v202
      %v587 = vadd.f32 %v586, %v203
      %v588 = vadd.f32 %v587, %v204
      %v589 = vadd.f32 %v588, %v205
      %v590 = vadd.f32 %v589, %v206
      %v591 = vadd.f32 %v590, %v207
      %v592 = vadd.f32 %v591, %v208
      %v593 = vadd.f32 %v592, %v209
      %v594 = vadd.f32 %v593, %v210
      %v595 = vadd.f32 %v594, %v211
      %v596 = vadd.f32 %v595, %v212
      %v597 = vadd.f32 %v596, %v213
      %v598 = vadd.f32 %v597, %v214
      %v599 = vadd.f32 %v598, %v215
      %v600 = vadd.f32 %v599, %v216
      %v601 = vadd.f32 %v600, %v217
      %v602 = vadd.f32 %v601, %v218
      %v603 = vadd.f32 %v602, %v219
      %v604 = vadd.f32 %v603, %v220
      %v605 = vadd.f32 %v604, %v221
      %v606 = vadd.f32 %v605, %v222
      %v607 = vadd.f32 %v581, %v606
      %608 = vst [vmem:[#allocation8] sm:$0xff] %v607
      %v609 = vld [vmem:[#allocation10] sm:$0xff]
      %v610 = vadd.f32 %v171, %v172
      %v611 = vadd.f32 %v610, %v173
      %v612 = vadd.f32 %v611, %v174
      %v613 = vadd.f32 %v612, %v175
      %v614 = vadd.f32 %v613, %v176
      %v615 = vadd.f32 %v614, %v177
      %v616 = vadd.f32 %v615, %v178
      %v617 = vadd.f32 %v616, %v179
      %v618 = vadd.f32 %v617, %v180
      %v619 = vadd.f32 %v618, %v181
      %v620 = vadd.f32 %v619, %v182
      %v621 = vadd.f32 %v620, %v183
      %v622 = vadd.f32 %v621, %v184
      %v623 = vadd.f32 %v622, %v185
      %v624 = vadd.f32 %v623, %v186
      %v625 = vadd.f32 %v624, %v187
      %v626 = vadd.f32 %v625, %v188
      %v627 = vadd.f32 %v626, %v189
      %v628 = vadd.f32 %v627, %v190
      %v629 = vadd.f32 %v628, %v191
      %v630 = vadd.f32 %v629, %v192
      %v631 = vadd.f32 %v630, %v193
      %v632 = vadd.f32 %v631, %v194
      %v633 = vadd.f32 %v632, %v195
      %v634 = vadd.f32 %v633, %v196
      %v635 = vadd.f32 %v609, %v634
      %636 = vst [vmem:[#allocation10] sm:$0xff] %v635
    $region29: #{tpu_custom_call.1} parent=1 // pred_fallthru
      _
    // Predicated region
    $region30: #{tpu_custom_call.1} parent=1 // pred_check
      _
    $region31: #{tpu_custom_call.1} parent=1 // pred_check_branch
      %638 = sbr.rel (0) target = $region33
    $region32: #{tpu_custom_call.1} parent=1 // pred_region
      %640 = vsyncadd [#allocation4], 0
      %s642 = sshll.u32 [#allocation7], 4
      %s643 = int_to_ptr.vmem [resolvable:$true] %s642
      %s644 = sshll.u32 %s2, 4
      %s645 = int_to_ptr.hbm [resolvable:$true] %s644
      %647 = dma.vmem_to_hbm [thread:$0]  %s643, 128, %s645, [#allocation4]
    $region33: #{tpu_custom_call.1} parent=1 // pred_fallthru
      _
    // Predicated region
    $region34: #{tpu_custom_call.1} parent=1 // pred_check
      _
    $region35: #{tpu_custom_call.1} parent=1 // pred_check_branch
      %649 = sbr.rel (0) target = $region37
    $region36: #{tpu_custom_call.1} parent=1 // pred_region
      %651 = vsyncadd [#allocation9], 0
      %s653 = sshll.u32 [#allocation8], 4
      %s654 = int_to_ptr.vmem [resolvable:$true] %s653
      %s655 = sshll.u32 %s3, 4
      %s656 = int_to_ptr.hbm [resolvable:$true] %s655
      %658 = dma.vmem_to_hbm [thread:$0]  %s654, 128, %s656, [#allocation9]
    $region37: #{tpu_custom_call.1} parent=1 // pred_fallthru
      _
    // Predicated region
    $region38: #{tpu_custom_call.1} parent=1 // pred_check
      _
    $region39: #{tpu_custom_call.1} parent=1 // pred_check_branch
      %660 = sbr.rel (0) target = $region41
    $region40: #{tpu_custom_call.1} parent=1 // pred_region
      %662 = vsyncadd [#allocation9], 0
      %s664 = sshll.u32 [#allocation10], 4
      %s665 = int_to_ptr.vmem [resolvable:$true] %s664
      %s666 = sshll.u32 %s4, 4
      %s667 = int_to_ptr.hbm [resolvable:$true] %s666
      %669 = dma.vmem_to_hbm [thread:$0]  %s665, 128, %s667, [#allocation9]
    $region41: #{tpu_custom_call.1} parent=1 // pred_fallthru
      _
    // Predicated region
    $region42: #{tpu_custom_call.1} parent=1 // pred_check
      _
    $region43: #{tpu_custom_call.1} parent=1 // pred_check_branch
      %671 = sbr.rel (0) target = $region45
    $region44: #{tpu_custom_call.1} parent=1 // pred_region
      %673 = dma.done [#allocation4], 128
    $region45: #{tpu_custom_call.1} parent=1 // pred_fallthru
      _
    // Predicated region
    $region46: #{tpu_custom_call.1} parent=1 // pred_check
      _
    $region47: #{tpu_custom_call.1} parent=1 // pred_check_branch
      %675 = sbr.rel (0) target = $region49
    $region48: #{tpu_custom_call.1} parent=1 // pred_region
      %677 = dma.done [#allocation9], 128
    $region49: #{tpu_custom_call.1} parent=1 // pred_fallthru
      _
    // Predicated region
    $region50: #{tpu_custom_call.1} parent=1 // pred_check
      _
    $region51: #{tpu_custom_call.1} parent=1 // pred_check_branch
      %679 = sbr.rel (0) target = $region53
    $region52: #{tpu_custom_call.1} parent=1 // pred_region
      %681 = dma.done [#allocation9], 128
    $region53: #{tpu_custom_call.1} parent=1 // pred_fallthru
      _
    %682 = vsyncpa [#allocation3], 1
    %683 = vsyncpa [#allocation6], 1
    %684 = vsyncpa [#allocation4], 1
    %685 = vsyncpa [#allocation9], 1

</llo_original>
